<compile_context>
chip_gen: v7x
topology: tpu7x:2x2x1
jax: 0.10.0
libtpu: 0.0.40
codegen_flags: <defaults>
</compile_context>

<pallas_src>
import jax
import jax.numpy as jnp
import numpy as np
from jax.experimental import pallas as pl
from jax.experimental.pallas import tpu as pltpu

CIN = 16
COUT = 8


def _conv1x1_kernel(x_ref, w_ref, b_ref, o_ref):
    # x_ref: (bn, Cin, T)   w_ref: (Cout, Cin)   b_ref: (Cout, 1)
    # o_ref: (bn, Cout, T)
    w = w_ref[...]
    bvec = b_ref[...]                       # (Cout, 1) broadcasts along lanes
    for i in range(x_ref.shape[0]):         # static unroll over the batch block
        acc = jnp.dot(w, x_ref[i], preferred_element_type=jnp.float32)
        o_ref[i] = (acc + bvec).astype(o_ref.dtype)


def conv1x1(x_nchw, weight, bias, *, max_tile_hw=65536, small_spatial_lanes=2048,
            tiny_xla_fallback=False):
    """1x1 conv, stride 1 (bias included).

    x_nchw: (N, Cin, H, W) float32
    weight: (Cout, Cin, 1, 1) float32 (PyTorch layout)
    bias:   (Cout,) float32
    returns (N, Cout, H, W) float32
    """
    n, cin, h, w = x_nchw.shape
    cout = weight.shape[0]
    hw = h * w

    w2d = weight.reshape(cout, cin)         # (Cout, Cin)
    b2d = bias.reshape(cout, 1)             # (Cout, 1), broadcasts along lanes

    if tiny_xla_fallback and n * hw <= 128:
        # Degenerate inputs (like the module's (1,16,1,1)): a kernel launch is
        # pure overhead -- let XLA fuse the 128-MAC einsum with its neighbors.
        return (jnp.einsum("nchw,oc->nohw", x_nchw, w2d)
                + bias.reshape(1, cout, 1, 1)).astype(x_nchw.dtype)

    # NCHW is already channel-major over a contiguous H*W: no transpose needed.
    x3d = x_nchw.reshape(n, cin, hw)

    # Pad the lane axis to a multiple of 128 -> aligned, unmasked vector
    # loads/stores on every full block (pad cost is negligible: <=127 lanes).
    hw_p = ((hw + 127) // 128) * 128
    if hw_p != hw:
        x3d = jnp.pad(x3d, ((0, 0), (0, 0), (0, hw_p - hw)))

    # ---- batch-block / tile selection -------------------------------------
    # Fold several images into one grid step when the spatial extent is small,
    # amortizing the ~0.35us fixed per-step cost.
    bn = 1
    if hw_p <= small_spatial_lanes:
        bn = int(min(n, max(1, small_spatial_lanes // hw_p)))

    # Spatial tile: multiple of 128 lanes, capped by max_tile_hw, the (padded)
    # extent, and a VMEM budget for the double-buffered in+out blocks.
    vmem_block_budget = 40 << 20
    t_vmem_cap = (vmem_block_budget // (2 * bn * (cin + cout) * 4) // 128) * 128
    t = max(128, (min(max_tile_hw, hw_p, t_vmem_cap) // 128) * 128)

    # If the batch grid axis collapses to 1, keep >=2 spatial tiles so both
    # v7x TensorCores get work (both grid axes are "parallel").
    if n <= bn and t >= hw_p and hw_p >= 1024:
        t = max(128, (hw_p // 2 // 128) * 128)

    grid = (pl.cdiv(n, bn), pl.cdiv(hw_p, t))

    # Explicit scoped-VMEM limit: double-buffered x/out blocks + slack, kept
    # between 16 MiB (every generation's comfortable default) and 48 MiB
    # (under v7x's 64 MiB physical VMEM).
    blk_bytes = 2 * bn * (cin + cout) * t * 4
    vmem_limit = int(min(max(blk_bytes + (2 << 20), 16 << 20), 48 << 20))

    cost = pl.CostEstimate(
        flops=2 * cout * cin * n * hw_p,
        transcendentals=0,
        bytes_accessed=4 * ((cin + cout) * n * hw_p + cout * cin + cout),
    )

    out3d = pl.pallas_call(
        _conv1x1_kernel,
        out_shape=jax.ShapeDtypeStruct((n, cout, hw_p), x_nchw.dtype),
        grid_spec=pltpu.PrefetchScalarGridSpec(
            num_scalar_prefetch=0,
            grid=grid,
            in_specs=[
                pl.BlockSpec((bn, cin, t), lambda b, j: (b, 0, j)),
                pl.BlockSpec((cout, cin), lambda b, j: (0, 0)),   # resident
                pl.BlockSpec((cout, 1), lambda b, j: (0, 0)),     # resident
            ],
            out_specs=pl.BlockSpec((bn, cout, t), lambda b, j: (b, 0, j)),
        ),
        compiler_params=pltpu.CompilerParams(
            dimension_semantics=("parallel", "parallel"),
            vmem_limit_bytes=vmem_limit),
        cost_estimate=cost,
    )(x3d, w2d, b2d)

    if hw_p != hw:
        out3d = out3d[:, :, :hw]
    return out3d.reshape(n, cout, h, w)


def _reference(x, weight, bias):
    cout, cin = weight.shape[0], weight.shape[1]
    return (jnp.einsum("nchw,oc->nohw", x, weight.reshape(cout, cin))
            + bias.reshape(1, cout, 1, 1))


if __name__ == "__main__":
    key = jax.random.PRNGKey(0)
    kx, kw, kb, kx2, kx3 = jax.random.split(key, 5)

    weight = jax.random.normal(kw, (COUT, CIN, 1, 1), dtype=jnp.float32) * 0.1
    bias = jax.random.normal(kb, (COUT,), dtype=jnp.float32) * 0.1

    # 1) Exact module shape from the spec: (1, 16, 1, 1) -> lane-pad path.
    x_small = jax.random.normal(kx, (1, CIN, 1, 1), dtype=jnp.float32)
    out_small = jax.block_until_ready(conv1x1(x_small, weight, bias))
    np.testing.assert_allclose(
        np.asarray(out_small),
        np.asarray(_reference(x_small, weight, bias)),
        rtol=1e-5, atol=1e-5)

    # 2) Small-spatial, multi-image: exercises the batch-folded (bn=2) block.
    x_mid = jax.random.normal(kx2, (2, CIN, 16, 16), dtype=jnp.float32)
    out_mid = jax.block_until_ready(conv1x1(x_mid, weight, bias))
    np.testing.assert_allclose(
        np.asarray(out_mid),
        np.asarray(_reference(x_mid, weight, bias)),
        rtol=1e-5, atol=1e-5)

    # 3) N=1, non-128-multiple H*W: exercises lane padding, the >=2-spatial-tile
    #    split, and the masked remainder block.
    x_big = jax.random.normal(kx3, (1, CIN, 40, 40), dtype=jnp.float32)
    out_big = jax.block_until_ready(conv1x1(x_big, weight, bias))
    np.testing.assert_allclose(
        np.asarray(out_big),
        np.asarray(_reference(x_big, weight, bias)),
        rtol=1e-5, atol=1e-5)

    print("KERNEL_OK")
</pallas_src>

<mosaic_0001>
module attributes {stable_mosaic.version = 11 : i64} {
  func.func @_conv1x1_kernel(%arg0: i32, %arg1: i32, %arg2: memref<1x16x128xf32, #tpu.memory_space<vmem>>, %arg3: memref<8x16xf32, #tpu.memory_space<vmem>>, %arg4: memref<8x1xf32, #tpu.memory_space<vmem>>, %arg5: memref<1x8x128xf32, #tpu.memory_space<vmem>>) attributes {dimension_semantics = [#tpu.dimension_semantics<parallel>, #tpu.dimension_semantics<parallel>], iteration_bounds = array<i64: 1, 1>, scalar_prefetch = 0 : i64, scratch_operands = 0 : i64, tpu.core_type = #tpu.core_type<tc>, window_params = [{transform_indices = @transform_0, window_bounds = array<i64: 1, 16, 128>}, {pipeline_mode = #tpu.pipeline_mode<synchronous>, transform_indices = @transform_1, window_bounds = array<i64: 8, 16>}, {pipeline_mode = #tpu.pipeline_mode<synchronous>, transform_indices = @transform_2, window_bounds = array<i64: 8, 1>}, {transform_indices = @transform_3, window_bounds = array<i64: 1, 8, 128>}]} {
    %c0 = arith.constant 0 : index
    %c0_0 = arith.constant 0 : index
    %0 = vector.load %arg3[%c0, %c0_0] : memref<8x16xf32, #tpu.memory_space<vmem>>, vector<8x16xf32>
    %c0_1 = arith.constant 0 : index
    %c0_2 = arith.constant 0 : index
    %1 = vector.load %arg4[%c0_1, %c0_2] : memref<8x1xf32, #tpu.memory_space<vmem>>, vector<8x1xf32>
    %c0_3 = arith.constant 0 : index
    %c0_4 = arith.constant 0 : index
    %c0_5 = arith.constant 0 : index
    %2 = vector.load %arg2[%c0_3, %c0_4, %c0_5] : memref<1x16x128xf32, #tpu.memory_space<vmem>>, vector<1x16x128xf32>
    %3 = vector.shape_cast %2 : vector<1x16x128xf32> to vector<16x128xf32>
    %cst = arith.constant dense<0.000000e+00> : vector<8x128xf32>
    %4 = tpu.matmul %0, %3, %cst {dimension_numbers = #tpu.dot_dimension_numbers<[1], [0], [0], [1], [0, 0, 1, 1], [], []>} : vector<8x16xf32>, vector<16x128xf32>, vector<8x128xf32> -> vector<8x128xf32>
    %5 = vector.broadcast %1 : vector<8x1xf32> to vector<8x128xf32>
    %6 = arith.addf %4, %5 : vector<8x128xf32>
    %c0_6 = arith.constant 0 : index
    %c0_7 = arith.constant 0 : index
    %c0_8 = arith.constant 0 : index
    %7 = vector.load %arg5[%c0_6, %c0_7, %c0_8] : memref<1x8x128xf32, #tpu.memory_space<vmem>>, vector<1x8x128xf32>
    %8 = vector.shape_cast %7 : vector<1x8x128xf32> to vector<8x128xf32>
    %9 = vector.shape_cast %6 : vector<8x128xf32> to vector<1x8x128xf32>
    tpu.vector_store %arg5[%c0_6, %c0_7, %c0_8], %9 {strides = array<i32>} : memref<1x8x128xf32, #tpu.memory_space<vmem>>, vector<1x8x128xf32>,
    return
  }
  func.func @transform_0(%arg0: i32, %arg1: i32) -> (i32, i32, i32) {
    %c0_i32 = arith.constant 0 : i32
    %c0_i32_0 = arith.constant 0 : i32
    return %arg0, %c0_i32, %arg1 : i32, i32, i32
  }
  func.func @transform_1(%arg0: i32, %arg1: i32) -> (i32, i32) {
    %c0_i32 = arith.constant 0 : i32
    %c0_i32_0 = arith.constant 0 : i32
    %c0_i32_1 = arith.constant 0 : i32
    return %c0_i32, %c0_i32_0 : i32, i32
  }
  func.func @transform_2(%arg0: i32, %arg1: i32) -> (i32, i32) {
    %c0_i32 = arith.constant 0 : i32
    %c0_i32_0 = arith.constant 0 : i32
    %c0_i32_1 = arith.constant 0 : i32
    return %c0_i32, %c0_i32_0 : i32, i32
  }
  func.func @transform_3(%arg0: i32, %arg1: i32) -> (i32, i32, i32) {
    %c0_i32 = arith.constant 0 : i32
    %c0_i32_0 = arith.constant 0 : i32
    return %arg0, %c0_i32, %arg1 : i32, i32, i32
  }
}

</mosaic_0001>

<llo_original>
// kernel: tpu_custom_call.1
$region0: #{tpu_custom_call.1}
  #allocation0 [shape = 'u32[]', space=smem, size = 0x4, offset = 0x4, fixed_abs, tag = 'smem constant byte address 0x4 - core index']
  #allocation1 [shape = 'u32[144,128]{1,0:T(1,128)}', space=vmem, size = 0x12000, scoped, tag = 'internal scratch']
  %s0 = inlined_call_operand.hbm [shape: f32[1,16,128], index: 0, kind: input, shape index: {}]
  %s1 = inlined_call_operand.vmem [shape: f32[8,16], index: 1, kind: input, shape index: {}]
  %s2 = inlined_call_operand.vmem [shape: f32[8,1], index: 2, kind: input, shape index: {}]
  %s3 = inlined_call_operand.hbm [shape: f32[1,8,128], index: 3, kind: output, shape index: {}]
  %s4 = sld [smem:[#allocation0]]
  $region26: #{tpu_custom_call.1} parent=0
    _
  %s6 = ssub.s32 1, %s4
  %s7 = scalar_select 0, %s6, %s4
  $region1: #{tpu_custom_call.1} parent=0
    #allocation2 [shape = 'u8[8192]{0}', space=vmem, size = 0x2000, scoped, tag = 'input window, operand 0, single buffered']
    #allocation3 [shape = 's32[1]{0}', space=sflag, size = 0x4, scoped, tag = 'scoped memory for tpu_custom_call.1']
    #allocation4 [shape = 's32[1]{0}', space=sflag, size = 0x4, scoped, tag = 'scoped memory for tpu_custom_call.1']
    #allocation5 [shape = 'u8[4096]{0}', space=vmem, size = 0x1000, scoped, tag = 'output window, operand 0, single buffered']
    %8 = vsyncpa [#allocation3], 0
    %9 = vsyncpa [#allocation4], 0
    // Predicated region
    $region2: #{tpu_custom_call.1} parent=1 // pred_check
      _
    $region3: #{tpu_custom_call.1} parent=1 // pred_check_branch
      %11 = sbr.rel (0) target = $region5
    $region4: #{tpu_custom_call.1} parent=1 // pred_region
      %s13 = ssub.s32 256, 256
      %14 = vsyncadd [#allocation3], %s13
      %s15 = sshll.u32 [#allocation2], 4
      %s16 = int_to_ptr.vmem [resolvable:$true] %s15
      %21 = dma.hbm_to_vmem [thread:$0]  %s0, 256, %s16, [#allocation3], 128, 128, 8
    $region5: #{tpu_custom_call.1} parent=1 // pred_fallthru
      _
    // Predicated region
    $region6: #{tpu_custom_call.1} parent=1 // pred_check
      _
    $region7: #{tpu_custom_call.1} parent=1 // pred_check_branch
      %23 = sbr.rel (0) target = $region9
    $region8: #{tpu_custom_call.1} parent=1 // pred_region
      _
    $region9: #{tpu_custom_call.1} parent=1 // pred_fallthru
      _
    // Predicated region
    $region10: #{tpu_custom_call.1} parent=1 // pred_check
      _
    $region11: #{tpu_custom_call.1} parent=1 // pred_check_branch
      %25 = sbr.rel (0) target = $region13
    $region12: #{tpu_custom_call.1} parent=1 // pred_region
      _
    $region13: #{tpu_custom_call.1} parent=1 // pred_fallthru
      _
    // Predicated region
    $region14: #{tpu_custom_call.1} parent=1 // pred_check
      _
    $region15: #{tpu_custom_call.1} parent=1 // pred_check_branch
      %27 = sbr.rel (0) target = $region17
    $region16: #{tpu_custom_call.1} parent=1 // pred_region
      %28 = dma.done [#allocation3], 256
    $region17: #{tpu_custom_call.1} parent=1 // pred_fallthru
      _
    %v29 = vld [vmem:[%s1] sm:$0xff]
    %v30 = vld [vmem:[%s2] sm:$0xff]
    %v31 = vld [vmem:[#allocation2] sm:$0xff]
    %v32 = vld [vmem:[#allocation2 + $0x8] sm:$0xff]
    %34 = vset.pattern.permute.xlu0 0
    %35 = vperm.xlu0 %34, %v30
    %v36 = vpop.permute.xlu0 %35
    %vm38 = vcmask 130048
    %v40 = vsel %vm38, %v29, 0
    %42 = vmatprep.subr.mxu0 0.0
    %43 = vmatpush1.msra.mxu0 %v31
    %44 = vmatprep.subr.mxu0 0.0
    %45 = vmatpush1.msra.mxu0 %v32
    %46 = vmatprep.subr.mxu0 0.0
    %47 = vmatpush1.msra.mxu0 0.0
    %48 = vmatprep.subr.mxu0 0.0
    %49 = vmatpush1.msra.mxu0 0.0
    %50 = vmatprep.subr.mxu0 0.0
    %51 = vmatpush1.msra.mxu0 0.0
    %52 = vmatprep.subr.mxu0 0.0
    %53 = vmatpush1.msra.mxu0 0.0
    %54 = vmatprep.subr.mxu0 0.0
    %55 = vmatpush1.msra.mxu0 0.0
    %56 = vmatprep.subr.mxu0 0.0
    %57 = vmatpush1.msra.mxu0 0.0
    %58 = vmatprep.subr.mxu0 0.0
    %59 = vmatpush1.msra.mxu0 0.0
    %60 = vmatprep.subr.mxu0 0.0
    %61 = vmatpush1.msra.mxu0 0.0
    %62 = vmatprep.subr.mxu0 0.0
    %63 = vmatpush1.msra.mxu0 0.0
    %64 = vmatprep.subr.mxu0 0.0
    %65 = vmatpush1.msra.mxu0 0.0
    %66 = vmatprep.subr.mxu0 0.0
    %67 = vmatpush1.msra.mxu0 0.0
    %68 = vmatprep.subr.mxu0 0.0
    %69 = vmatpush1.msra.mxu0 0.0
    %70 = vmatprep.subr.mxu0 0.0
    %71 = vmatpush1.msra.mxu0 0.0
    %72 = vmatprep.subr.mxu0 0.0
    %73 = vmatpush1.msra.mxu0 0.0
    %74 = vmatprep.subr.mxu0 0.0
    %75 = vmatpush1.msra.mxu0 0.0
    %76 = vmatprep.subr.mxu0 0.0
    %77 = vmatpush1.msra.mxu0 0.0
    %78 = vmatprep.subr.mxu0 0.0
    %79 = vmatpush1.msra.mxu0 0.0
    %80 = vmatprep.subr.mxu0 0.0
    %81 = vmatpush1.msra.mxu0 0.0
    %82 = vmatprep.subr.mxu0 0.0
    %83 = vmatpush1.msra.mxu0 0.0
    %84 = vmatprep.subr.mxu0 0.0
    %85 = vmatpush1.msra.mxu0 0.0
    %86 = vmatprep.subr.mxu0 0.0
    %87 = vmatpush1.msra.mxu0 0.0
    %88 = vmatprep.subr.mxu0 0.0
    %89 = vmatpush1.msra.mxu0 0.0
    %90 = vmatprep.subr.mxu0 0.0
    %91 = vmatpush1.msra.mxu0 0.0
    %92 = vmatprep.subr.mxu0 0.0
    %93 = vmatpush1.msra.mxu0 0.0
    %94 = vmatprep.subr.mxu0 0.0
    %95 = vmatpush1.msra.mxu0 0.0
    %96 = vmatprep.subr.mxu0 0.0
    %97 = vmatpush1.msra.mxu0 0.0
    %98 = vmatprep.subr.mxu0 0.0
    %99 = vmatpush1.msra.mxu0 0.0
    %100 = vmatprep.subr.mxu0 0.0
    %101 = vmatpush1.msra.mxu0 0.0
    %102 = vmatprep.subr.mxu0 0.0
    %103 = vmatpush1.msra.mxu0 0.0
    %104 = vmatprep.subr.mxu0 0.0
    %105 = vmatpush1.msra.mxu0 0.0
    %106 = vmatprep.mubr.f32.mxu0 0.0
    %107 = vmatmul.mubr.f32.gmra.mrb[0].mxu0 %v40
    %v108 = vpop.f32.mrb[0].mxu0
    %v109 = vadd.f32 %v36, %v108
    %v110 = vpop.f32.mrb[0].mxu0
    %111 = vdwg.mxu0
    %112 = vst [vmem:[#allocation5] sm:$0xff] %v109
    // Predicated region
    $region18: #{tpu_custom_call.1} parent=1 // pred_check
      _
    $region19: #{tpu_custom_call.1} parent=1 // pred_check_branch
      %114 = sbr.rel (0) target = $region21
    $region20: #{tpu_custom_call.1} parent=1 // pred_region
      %s116 = ssub.s32 128, 128
      %117 = vsyncadd [#allocation4], %s116
      %s119 = sshll.u32 [#allocation5], 4
      %s120 = int_to_ptr.vmem [resolvable:$true] %s119
      %122 = dma.vmem_to_hbm [thread:$0]  %s120, 128, %s3, [#allocation4]
    $region21: #{tpu_custom_call.1} parent=1 // pred_fallthru
      _
    // Predicated region
    $region22: #{tpu_custom_call.1} parent=1 // pred_check
      _
    $region23: #{tpu_custom_call.1} parent=1 // pred_check_branch
      %124 = sbr.rel (0) target = $region25
    $region24: #{tpu_custom_call.1} parent=1 // pred_region
      %125 = dma.done [#allocation4], 128
    $region25: #{tpu_custom_call.1} parent=1 // pred_fallthru
      _
    %126 = vsyncpa [#allocation3], 1
    %127 = vsyncpa [#allocation4], 1

</llo_original>
